<compile_context>
chip_gen: v6e
topology: v6e:2x2x1
jax: 0.10.0
libtpu: 0.0.40
codegen_flags: <defaults>
</compile_context>

<pallas_src>
import functools

import jax
import jax.numpy as jnp
from jax.experimental import pallas as pl
from jax.experimental.pallas import tpu as pltpu


def _snorm_lane_kernel(x_ref, g_ref, b_ref, o_ref, *, n, t):
    """Lane-dense path: x_ref/o_ref are (rb, N*T).  The node-axis reduction is
    a strided lane group-sum done with a tree of XLU rolls (requires N = 2^k)."""
    x = x_ref[...].astype(jnp.float32)              # (rb, L), L = n * t

    def group_sum(v):
        # After log2(n) doubling steps every lane holds the sum over the node
        # axis for its own t-phase (circular roll over the full N*T lane axis).
        s = v
        shift = t
        while shift < n * t:
            s = s + pltpu.roll(s, shift=shift, axis=1)
            shift *= 2
        return s

    mean = group_sum(x) * jnp.float32(1.0 / n)
    diff = x - mean
    # Unbiased variance (divide by N - 1), matching torch.var(unbiased=True).
    var = group_sum(diff * diff) / jnp.float32(n - 1)
    inv = jax.lax.rsqrt(var + jnp.float32(1e-5))    # EUP slot, effectively free

    o_ref[...] = (diff * inv * g_ref[...] + b_ref[...]).astype(o_ref.dtype)


def _snorm_sublane_kernel(x_ref, g_ref, b_ref, o_ref):
    """Fallback path: x_ref/o_ref are (rb, N, T); reduce over the sublane axis."""
    x = x_ref[...].astype(jnp.float32)              # (rb, N, T)
    n = x.shape[1]
    mean = jnp.mean(x, axis=1, keepdims=True)
    diff = x - mean
    var = jnp.sum(diff * diff, axis=1, keepdims=True) / jnp.float32(n - 1)
    inv = jax.lax.rsqrt(var + jnp.float32(1e-5))
    o_ref[...] = (diff * inv * g_ref[...] + b_ref[...]).astype(o_ref.dtype)


def _tpu_budget():
    """(target_block_bytes, vmem_limit_bytes), generation-aware."""
    vmem = 128 * 1024 * 1024
    try:
        vmem = int(pltpu.get_tpu_info().vmem_capacity_bytes)
    except Exception:
        pass
    if vmem <= 64 * 1024 * 1024:
        # v7x-class: 3.2 TB/s HBM but only 64 MiB VMEM -> larger blocks to
        # amortize the ~0.35 us per-step overhead, with VMEM headroom for the
        # f32 temporaries (~3x block) + double-buffered in/out.
        return 4 * 1024 * 1024, 40 * 1024 * 1024
    # v5e / v6e: 128 MiB VMEM; 2 MiB blocks already keep step overhead <~10%.
    return 2 * 1024 * 1024, 32 * 1024 * 1024


def snorm(x, gamma, beta):
    """x: (B, C, N, T); gamma, beta: (C,). Returns (B, C, N, T)."""
    target_block_bytes, vmem_limit_bytes = _tpu_budget()
    return _snorm_impl(x, gamma, beta, target_block_bytes, vmem_limit_bytes)


@functools.partial(jax.jit, static_argnums=(3, 4))
def _snorm_impl(x, gamma, beta, target_block_bytes, vmem_limit_bytes):
    B, C, N, T = x.shape
    R = B * C
    L = N * T

    # Per-row scale/shift: row r = b*C + c carries gamma[c] / beta[c].
    gamma_rows = jnp.tile(gamma.astype(jnp.float32), B)
    beta_rows = jnp.tile(beta.astype(jnp.float32), B)

    # Size the row block by its f32 in-kernel footprint (kernel upcasts).
    row_bytes_f32 = L * 4
    rb = max(1, target_block_bytes // row_bytes_f32)
    rb = min(rb, R)

    compiler_params = pltpu.CompilerParams(
        dimension_semantics=("parallel",),
        vmem_limit_bytes=vmem_limit_bytes,
    )

    lane_dense = (L % 128 == 0) and (N & (N - 1) == 0)

    if lane_dense:
        # (8,128) rule on the last two block dims: rb must be a multiple of the
        # sublane pack (8 f32 / 16 bf16 / 32 int8) unless it is the full extent.
        pack = max(8, 32 // jnp.dtype(x.dtype).itemsize)
        if rb < R:
            rb = max(pack, (rb // pack) * pack)
            rb = min(rb, R)
        grid = (pl.cdiv(R, rb),)
        out = pl.pallas_call(
            functools.partial(_snorm_lane_kernel, n=N, t=T),
            out_shape=jax.ShapeDtypeStruct((R, L), x.dtype),
            grid=grid,
            in_specs=[
                pl.BlockSpec((rb, L), lambda i: (i, 0)),   # x slab (dense lanes)
                pl.BlockSpec((rb, 1), lambda i: (i, 0)),   # gamma per row
                pl.BlockSpec((rb, 1), lambda i: (i, 0)),   # beta per row
            ],
            out_specs=pl.BlockSpec((rb, L), lambda i: (i, 0)),
            compiler_params=compiler_params,
        )(x.reshape(R, L), gamma_rows.reshape(R, 1), beta_rows.reshape(R, 1))
    else:
        # TODO(synk): narrow lane axis (T < 128) on this fallback -> masked
        # stores; HBM DMAs remain fully contiguous, so it stays near roofline
        # on v5e/v6e but may become store-slot-bound on v7x.
        grid = (pl.cdiv(R, rb),)
        out = pl.pallas_call(
            _snorm_sublane_kernel,
            out_shape=jax.ShapeDtypeStruct((R, N, T), x.dtype),
            grid=grid,
            in_specs=[
                pl.BlockSpec((rb, N, T), lambda i: (i, 0, 0)),   # N, T full extent
                pl.BlockSpec((rb, 1, 1), lambda i: (i, 0, 0)),
                pl.BlockSpec((rb, 1, 1), lambda i: (i, 0, 0)),
            ],
            out_specs=pl.BlockSpec((rb, N, T), lambda i: (i, 0, 0)),
            compiler_params=compiler_params,
        )(x.reshape(R, N, T), gamma_rows.reshape(R, 1, 1),
          beta_rows.reshape(R, 1, 1))

    # Free reshape back to the module's (B, C, N, T) layout.
    return out.reshape(B, C, N, T)


def snorm_ref(x, gamma, beta):
    mean = jnp.mean(x, axis=2, keepdims=True)
    var = jnp.var(x, axis=2, keepdims=True, ddof=1)
    x_norm = (x - mean) / jnp.sqrt(var + 1e-5)
    return x_norm * gamma.reshape(1, -1, 1, 1) + beta.reshape(1, -1, 1, 1)


if __name__ == "__main__":
    key = jax.random.PRNGKey(0)

    # Lane-dense (roll) path: N power of two, N*T multiple of 128.
    B, C, N, T = 2, 4, 16, 16
    x = jax.random.normal(key, (B, C, N, T), dtype=jnp.float32)
    gamma = 1.0 + 0.1 * jnp.arange(C, dtype=jnp.float32)
    beta = 0.01 * jnp.arange(C, dtype=jnp.float32)

    out = snorm(x, gamma, beta)
    jax.block_until_ready(out)
    ref = snorm_ref(x, gamma, beta)
    assert out.shape == (B, C, N, T)
    assert jnp.allclose(out, ref, atol=1e-5, rtol=1e-5)

    # Transpose-free fallback path: N not a power of two, lane axis not a
    # multiple of 128 (typical STNorm config).
    B2, C2, N2, T2 = 2, 3, 10, 12
    x2 = jax.random.normal(jax.random.PRNGKey(1), (B2, C2, N2, T2), jnp.float32)
    g2 = 1.0 + 0.05 * jnp.arange(C2, dtype=jnp.float32)
    b2 = 0.02 * jnp.arange(C2, dtype=jnp.float32)
    out2 = snorm(x2, g2, b2)
    jax.block_until_ready(out2)
    ref2 = snorm_ref(x2, g2, b2)
    assert out2.shape == (B2, C2, N2, T2)
    assert jnp.allclose(out2, ref2, atol=1e-5, rtol=1e-5)

    print("KERNEL_OK")
</pallas_src>

<mosaic_0001>
module attributes {stable_mosaic.version = 11 : i64} {
  func.func @_snorm_lane_kernel(%arg0: i32, %arg1: memref<8x256xf32, #tpu.memory_space<vmem>>, %arg2: memref<8x1xf32, #tpu.memory_space<vmem>>, %arg3: memref<8x1xf32, #tpu.memory_space<vmem>>, %arg4: memref<8x256xf32, #tpu.memory_space<vmem>>) attributes {dimension_semantics = [#tpu.dimension_semantics<parallel>], iteration_bounds = array<i64: 1>, scalar_prefetch = 0 : i64, scratch_operands = 0 : i64, tpu.core_type = #tpu.core_type<tc>, window_params = [{transform_indices = @transform_0, window_bounds = array<i64: 8, 256>}, {transform_indices = @transform_1, window_bounds = array<i64: 8, 1>}, {transform_indices = @transform_2, window_bounds = array<i64: 8, 1>}, {transform_indices = @transform_3, window_bounds = array<i64: 8, 256>}]} {
    %c0 = arith.constant 0 : index
    %c0_0 = arith.constant 0 : index
    %0 = vector.load %arg1[%c0, %c0_0] : memref<8x256xf32, #tpu.memory_space<vmem>>, vector<8x256xf32>
    %c16_i32 = arith.constant 16 : i32
    %1 = tpu.dynamic_rotate %0 by %c16_i32 dim 1 : vector<8x256xf32>, i32 -> vector<8x256xf32>
    %2 = arith.addf %0, %1 : vector<8x256xf32>
    %c32_i32 = arith.constant 32 : i32
    %3 = tpu.dynamic_rotate %2 by %c32_i32 dim 1 : vector<8x256xf32>, i32 -> vector<8x256xf32>
    %4 = arith.addf %2, %3 : vector<8x256xf32>
    %c64_i32 = arith.constant 64 : i32
    %5 = tpu.dynamic_rotate %4 by %c64_i32 dim 1 : vector<8x256xf32>, i32 -> vector<8x256xf32>
    %6 = arith.addf %4, %5 : vector<8x256xf32>
    %c128_i32 = arith.constant 128 : i32
    %7 = tpu.dynamic_rotate %6 by %c128_i32 dim 1 : vector<8x256xf32>, i32 -> vector<8x256xf32>
    %8 = arith.addf %6, %7 : vector<8x256xf32>
    %cst = arith.constant 6.250000e-02 : f32
    %9 = vector.broadcast %cst : f32 to vector<8x256xf32>
    %10 = arith.mulf %8, %9 : vector<8x256xf32>
    %11 = arith.subf %0, %10 : vector<8x256xf32>
    %12 = arith.mulf %11, %11 : vector<8x256xf32>
    %c16_i32_1 = arith.constant 16 : i32
    %13 = tpu.dynamic_rotate %12 by %c16_i32_1 dim 1 : vector<8x256xf32>, i32 -> vector<8x256xf32>
    %14 = arith.addf %12, %13 : vector<8x256xf32>
    %c32_i32_2 = arith.constant 32 : i32
    %15 = tpu.dynamic_rotate %14 by %c32_i32_2 dim 1 : vector<8x256xf32>, i32 -> vector<8x256xf32>
    %16 = arith.addf %14, %15 : vector<8x256xf32>
    %c64_i32_3 = arith.constant 64 : i32
    %17 = tpu.dynamic_rotate %16 by %c64_i32_3 dim 1 : vector<8x256xf32>, i32 -> vector<8x256xf32>
    %18 = arith.addf %16, %17 : vector<8x256xf32>
    %c128_i32_4 = arith.constant 128 : i32
    %19 = tpu.dynamic_rotate %18 by %c128_i32_4 dim 1 : vector<8x256xf32>, i32 -> vector<8x256xf32>
    %20 = arith.addf %18, %19 : vector<8x256xf32>
    %cst_5 = arith.constant 1.500000e+01 : f32
    %21 = vector.broadcast %cst_5 : f32 to vector<8x256xf32>
    %22 = arith.divf %20, %21 : vector<8x256xf32>
    %cst_6 = arith.constant 9.99999974E-6 : f32
    %23 = vector.broadcast %cst_6 : f32 to vector<8x256xf32>
    %24 = arith.addf %22, %23 : vector<8x256xf32>
    %25 = math.rsqrt %24 : vector<8x256xf32>
    %26 = arith.mulf %11, %25 : vector<8x256xf32>
    %c0_7 = arith.constant 0 : index
    %c0_8 = arith.constant 0 : index
    %27 = vector.load %arg2[%c0_7, %c0_8] : memref<8x1xf32, #tpu.memory_space<vmem>>, vector<8x1xf32>
    %28 = vector.broadcast %27 : vector<8x1xf32> to vector<8x256xf32>
    %29 = arith.mulf %26, %28 : vector<8x256xf32>
    %c0_9 = arith.constant 0 : index
    %c0_10 = arith.constant 0 : index
    %30 = vector.load %arg3[%c0_9, %c0_10] : memref<8x1xf32, #tpu.memory_space<vmem>>, vector<8x1xf32>
    %31 = vector.broadcast %30 : vector<8x1xf32> to vector<8x256xf32>
    %32 = arith.addf %29, %31 : vector<8x256xf32>
    %c0_11 = arith.constant 0 : index
    %c0_12 = arith.constant 0 : index
    %33 = vector.load %arg4[%c0_11, %c0_12] : memref<8x256xf32, #tpu.memory_space<vmem>>, vector<8x256xf32>
    tpu.vector_store %arg4[%c0_11, %c0_12], %32 {strides = array<i32>} : memref<8x256xf32, #tpu.memory_space<vmem>>, vector<8x256xf32>,
    return
  }
  func.func @transform_0(%arg0: i32) -> (i32, i32) {
    %c0_i32 = arith.constant 0 : i32
    %c0_i32_0 = arith.constant 0 : i32
    return %arg0, %c0_i32 : i32, i32
  }
  func.func @transform_1(%arg0: i32) -> (i32, i32) {
    %c0_i32 = arith.constant 0 : i32
    %c0_i32_0 = arith.constant 0 : i32
    return %arg0, %c0_i32 : i32, i32
  }
  func.func @transform_2(%arg0: i32) -> (i32, i32) {
    %c0_i32 = arith.constant 0 : i32
    %c0_i32_0 = arith.constant 0 : i32
    return %arg0, %c0_i32 : i32, i32
  }
  func.func @transform_3(%arg0: i32) -> (i32, i32) {
    %c0_i32 = arith.constant 0 : i32
    %c0_i32_0 = arith.constant 0 : i32
    return %arg0, %c0_i32 : i32, i32
  }
}

</mosaic_0001>

<llo_original>
// kernel: tile.1
$region0: #{tile.1}
  %s0 = inlined_call_operand.vmem [shape: f32[2,4], index: 0, kind: input, shape index: {}]
  %s1 = inlined_call_operand.vmem [shape: f32[8,1], index: 1, kind: output, shape index: {}]
  $region1: #{tile.1} parent=0
    #allocation0 [shape = 'u8[4096]{0}', space=vmem, size = 0x1000, scoped, tag = 'scoped mem for input reshape']
    %s3 = sshll.u32 1, 2
    %s4 = ssub.s32 %s3, 1
    %v5 = vld [vmem:[%s0] sm:%s4]
    %6 = vst [vmem:[#allocation0] sm:%s4] %v5
    %v7 = vld [vmem:[#allocation0] sm:$0x3]
    %vm8 = vcmask 7168
    %9 = vst.msk [vmem:[%s1] ss:$4 sm:$0x3] %vm8, %v7
    %v10 = vld [vmem:[#allocation0] sm:$0x3]
    %11 = vrot.lane.b32.xlu0 %v10, 127
    %v12 = vpop.permute.xlu0 %11
    %vm13 = vcmask 7168
    %s14 = scalar_lea.vmem %s1, 1
    %15 = vst.msk [vmem:[%s14] ss:$4 sm:$0x3] %vm13, %v12
    %v16 = vld [vmem:[#allocation0] sm:$0x3]
    %17 = vrot.lane.b32.xlu0 %v16, 126
    %v18 = vpop.permute.xlu0 %17
    %vm19 = vcmask 7168
    %s20 = scalar_lea.vmem %s1, 2
    %21 = vst.msk [vmem:[%s20] ss:$4 sm:$0x3] %vm19, %v18
    %v22 = vld [vmem:[#allocation0] sm:$0x3]
    %23 = vrot.lane.b32.xlu0 %v22, 125
    %v24 = vpop.permute.xlu0 %23
    %vm25 = vcmask 7168
    %s26 = scalar_lea.vmem %s1, 3
    %27 = vst.msk [vmem:[%s26] ss:$4 sm:$0x3] %vm25, %v24

// kernel: tile.13
$region0: #{tile.13}
  #allocation0 [shape = 's32[1]{0}', space=sflag, size = 0x4, scoped, tag = 'scoped memory for tile.13']
  %s0 = inlined_call_operand.vmem [shape: f32[4], index: 0, kind: input, shape index: {}]
  %s1 = inlined_call_operand.vmem [shape: f32[2,4], index: 1, kind: output, shape index: {}]
  // Predicated region
  $region2: #{tile.13} parent=0 // pred_check
    _
  $region3: #{tile.13} parent=0 // pred_check_branch
    %3 = sbr.rel (0) target = $region5
  $region4: #{tile.13} parent=0 // pred_region
    _
  $region5: #{tile.13} parent=0 // pred_fallthru
    _
  %v4 = vld [vmem:[%s0] ss:$0 sm:$0xff]
  %5 = vst [vmem:[%s1] sm:$0x3] %v4

// kernel: _snorm_impl.1
$region0: #{_snorm_impl.1}
  #allocation0 [shape = 'u32[]', space=smem, size = 0x4, offset = 0x4, fixed_abs, tag = 'smem constant byte address 0x4 - core index']
  #allocation1 [shape = 'u32[144,128]{1,0:T(1,128)}', space=vmem, size = 0x12000, scoped, tag = 'internal scratch']
  %s0 = inlined_call_operand.vmem [shape: f32[8,256], index: 0, kind: input, shape index: {}]
  %s1 = inlined_call_operand.vmem [shape: f32[8,1], index: 1, kind: input, shape index: {}]
  %s2 = inlined_call_operand.vmem [shape: f32[8,1], index: 2, kind: input, shape index: {}]
  %s3 = inlined_call_operand.vmem [shape: f32[8,256], index: 3, kind: output, shape index: {}]
  %s4 = sld [smem:[#allocation0]]
  $region22: #{_snorm_impl.1} parent=0
    _
  %s6 = ssub.s32 1, %s4
  %s7 = scalar_select 0, %s6, %s4
  // Predicated region
  $region2: #{_snorm_impl.1} parent=0 // pred_check
    _
  $region3: #{_snorm_impl.1} parent=0 // pred_check_branch
    %9 = sbr.rel (0) target = $region5
  $region4: #{_snorm_impl.1} parent=0 // pred_region
    _
  $region5: #{_snorm_impl.1} parent=0 // pred_fallthru
    _
  // Predicated region
  $region6: #{_snorm_impl.1} parent=0 // pred_check
    _
  $region7: #{_snorm_impl.1} parent=0 // pred_check_branch
    %11 = sbr.rel (0) target = $region9
  $region8: #{_snorm_impl.1} parent=0 // pred_region
    _
  $region9: #{_snorm_impl.1} parent=0 // pred_fallthru
    _
  // Predicated region
  $region10: #{_snorm_impl.1} parent=0 // pred_check
    _
  $region11: #{_snorm_impl.1} parent=0 // pred_check_branch
    %13 = sbr.rel (0) target = $region13
  $region12: #{_snorm_impl.1} parent=0 // pred_region
    _
  $region13: #{_snorm_impl.1} parent=0 // pred_fallthru
    _
  %v14 = vld [vmem:[%s0] sm:$0xff]
  %v15 = vld [vmem:[%s0 + $0x8] sm:$0xff]
  %16 = vrot.lane.b32.xlu0 %v14, 16
  %v17 = vpop.permute.xlu0 %16
  %18 = vrot.lane.b32.xlu0 %v15, 16
  %v19 = vpop.permute.xlu0 %18
  %v20 = vlaneseq
  %v21 = vand.u32 %v20, 127
  %vm22 = vcmp.lt.s32.totalorder %v21, 16
  %v23 = vsel %vm22, %v17, %v19
  %v24 = vsel %vm22, %v19, %v17
  %v25 = vadd.f32 %v14, %v24
  %v26 = vadd.f32 %v15, %v23
  %27 = vrot.lane.b32.xlu0 %v25, 32
  %v28 = vpop.permute.xlu0 %27
  %29 = vrot.lane.b32.xlu0 %v26, 32
  %v30 = vpop.permute.xlu0 %29
  %vm31 = vcmp.lt.s32.totalorder %v21, 32
  %v32 = vsel %vm31, %v28, %v30
  %v33 = vsel %vm31, %v30, %v28
  %v34 = vadd.f32 %v25, %v33
  %v35 = vadd.f32 %v26, %v32
  %36 = vrot.lane.b32.xlu0 %v34, 64
  %v37 = vpop.permute.xlu0 %36
  %38 = vrot.lane.b32.xlu0 %v35, 64
  %v39 = vpop.permute.xlu0 %38
  %vm40 = vcmp.lt.s32.totalorder %v21, 64
  %v41 = vsel %vm40, %v37, %v39
  %v42 = vsel %vm40, %v39, %v37
  %v43 = vadd.f32 %v34, %v42
  %v44 = vadd.f32 %v35, %v41
  %v45 = vadd.f32 %v43, %v44
  %v46 = vmul.f32 %v45, 0.0625
  %v47 = vsub.f32 %v14, %v46
  %v48 = vsub.f32 %v15, %v46
  %v49 = vmul.f32 %v47, %v47
  %v50 = vmul.f32 %v48, %v48
  %51 = vrot.lane.b32.xlu0 %v49, 16
  %v52 = vpop.permute.xlu0 %51
  %53 = vrot.lane.b32.xlu0 %v50, 16
  %v54 = vpop.permute.xlu0 %53
  %v55 = vsel %vm22, %v52, %v54
  %v56 = vsel %vm22, %v54, %v52
  %v57 = vadd.f32 %v49, %v56
  %v58 = vadd.f32 %v50, %v55
  %59 = vrot.lane.b32.xlu0 %v57, 32
  %v60 = vpop.permute.xlu0 %59
  %61 = vrot.lane.b32.xlu0 %v58, 32
  %v62 = vpop.permute.xlu0 %61
  %v63 = vsel %vm31, %v60, %v62
  %v64 = vsel %vm31, %v62, %v60
  %v65 = vadd.f32 %v57, %v64
  %v66 = vadd.f32 %v58, %v63
  %67 = vrot.lane.b32.xlu0 %v65, 64
  %v68 = vpop.permute.xlu0 %67
  %69 = vrot.lane.b32.xlu0 %v66, 64
  %v70 = vpop.permute.xlu0 %69
  %v71 = vsel %vm40, %v68, %v70
  %v72 = vsel %vm40, %v70, %v68
  %v73 = vadd.f32 %v65, %v72
  %v74 = vadd.f32 %v66, %v71
  %v75 = vadd.f32 %v73, %v74
  %v76 = vrcp.pop 15.0
  %v77 = vmul.f32 %v75, %v76
  %v78 = vadd.f32 %v77, 1e-05
  %v79 = vrsqrt.pop %v78
  %v80 = vmul.f32 %v47, %v79
  %v81 = vmul.f32 %v48, %v79
  %v82 = vld [vmem:[%s1] sm:$0xff]
  %84 = vset.pattern.permute.xlu0 0
  %85 = vperm.xlu0 %84, %v82
  %v86 = vpop.permute.xlu0 %85
  %v88 = vmul.f32 %v80, %v86
  %v89 = vmul.f32 %v81, %v86
  %v90 = vld [vmem:[%s2] sm:$0xff]
  %92 = vset.pattern.permute.xlu0 0
  %93 = vperm.xlu0 %92, %v90
  %v94 = vpop.permute.xlu0 %93
  %v96 = vadd.f32 %v88, %v94
  %v97 = vadd.f32 %v89, %v94
  %98 = vst [vmem:[%s3] sm:$0xff] %v96
  %99 = vst [vmem:[%s3 + $0x8] sm:$0xff] %v97
  // Predicated region
  $region14: #{_snorm_impl.1} parent=0 // pred_check
    _
  $region15: #{_snorm_impl.1} parent=0 // pred_check_branch
    %101 = sbr.rel (0) target = $region17
  $region16: #{_snorm_impl.1} parent=0 // pred_region
    _
  $region17: #{_snorm_impl.1} parent=0 // pred_fallthru
    _
  // Predicated region
  $region18: #{_snorm_impl.1} parent=0 // pred_check
    _
  $region19: #{_snorm_impl.1} parent=0 // pred_check_branch
    %103 = sbr.rel (0) target = $region21
  $region20: #{_snorm_impl.1} parent=0 // pred_region
    _
  $region21: #{_snorm_impl.1} parent=0 // pred_fallthru
    _

</llo_original>
